<compile_context>
chip_gen: v5e
topology: v5e:2x2
jax: 0.10.0
libtpu: 0.0.40
codegen_flags: <defaults>
</compile_context>

<pallas_src>
import functools

import jax
import jax.numpy as jnp
import numpy as np
from jax.experimental import pallas as pl
from jax.experimental.pallas import tpu as pltpu

_MIB = 1024 * 1024


def _budgets():
    """Per-TPU-generation VMEM / block-size budgets (bytes)."""
    kind = ""
    try:
        kind = jax.devices()[0].device_kind.lower()
    except Exception:
        pass
    if "v7" in kind:
        # 64 MiB physical VMEM: keep headroom (<=48 MiB scoped limit).
        return dict(vmem_limit=48 * _MIB, pass1_block=12 * _MIB,
                    pass2_block=4 * _MIB, fuse_slab=10 * _MIB)
    if ("v6" in kind or "trillium" in kind or "v5e" in kind
            or "v5 lite" in kind or "v5litepod" in kind):
        # 128 MiB physical VMEM: raise limit well above the 16/32 MiB defaults.
        return dict(vmem_limit=96 * _MIB, pass1_block=16 * _MIB,
                    pass2_block=8 * _MIB, fuse_slab=20 * _MIB)
    # Unknown / older generations: conservative.
    return dict(vmem_limit=32 * _MIB, pass1_block=4 * _MIB,
                pass2_block=2 * _MIB, fuse_slab=4 * _MIB)


def _pick_hw_tile(hw, c, itemsize, max_block_bytes):
    """Lane tile for (C, hw_tile) blocks.

    Full HW if a single block fits the byte budget (block == full dim is always
    legal), otherwise the largest multiple of 128 that fits.  The grid is then
    cdiv(HW, tile) with a masked / clipped partial last tile — never the old
    "fall back to full HW" behaviour that could blow VMEM, never lane-sparse.
    """
    max_lanes = max(128, max_block_bytes // max(1, c * itemsize))
    if hw <= max_lanes:
        return hw
    return (max_lanes // 128) * 128


# --------------------------------------------------------------------------
# Fused single-pass kernel: pool + 3-tap channel conv + sigmoid gate + mul.
# --------------------------------------------------------------------------
def _fused_eca_kernel(w_ref, x_ref, o_ref, *, inv_hw):
    # w_ref : SMEM (3,) f32 conv taps.
    # x_ref, o_ref : (C, HW) full per-batch slab (input dtype).
    x = x_ref[...]
    # Global average pool; f32 accumulation without materializing an upcast
    # of the whole slab.
    y = jnp.sum(x, axis=-1, keepdims=True, dtype=jnp.float32) * inv_hw  # (C,1)
    c = y.shape[0]
    # 3-tap conv across channels: neighbours via sublane rotation, zero-padded
    # edges via iota masking (matches Conv1d(k=3, pad=1, bias=False)).
    y_prev = pltpu.roll(y, 1, 0)          # y_prev[c] = y[c-1]   (wraps at c=0)
    y_next = pltpu.roll(y, c - 1, 0)      # y_next[c] = y[c+1]   (wraps at c=C-1)
    ch = jax.lax.broadcasted_iota(jnp.int32, y.shape, 0)
    y_prev = jnp.where(ch == 0, 0.0, y_prev)
    y_next = jnp.where(ch == c - 1, 0.0, y_next)
    conv = w_ref[0] * y_prev + w_ref[1] * y + w_ref[2] * y_next
    gate = jax.nn.sigmoid(conv).astype(x.dtype)   # cast gate down, not x up
    o_ref[...] = x * gate                         # broadcast over lanes


# --------------------------------------------------------------------------
# Two-pass fallback, pass 1: tiled global average pool (f32 accumulation).
# --------------------------------------------------------------------------
def _pool_kernel(x_ref, y_ref, *, inv_hw, hw, hw_tile, ragged):
    # x_ref: (C, hw_tile) spatial tile.  y_ref: (C, 1) f32 resident accumulator
    # (its block index does not depend on the spatial grid axis).
    s = pl.program_id(1)

    @pl.when(s == 0)
    def _init():
        y_ref[...] = jnp.zeros_like(y_ref)

    x = x_ref[...]
    if ragged:
        # Mask lanes past HW in the (clamped) partial last tile.
        lane = jax.lax.broadcasted_iota(jnp.int32, x.shape, 1) + s * hw_tile
        x = jnp.where(lane < hw, x, 0)
    y_ref[...] += jnp.sum(x, axis=-1, keepdims=True, dtype=jnp.float32)

    @pl.when(s == pl.num_programs(1) - 1)
    def _finalize():
        y_ref[...] = y_ref[...] * inv_hw  # sum -> mean


# --------------------------------------------------------------------------
# Two-pass fallback, pass 2: broadcast multiply by a precomputed gate.
# --------------------------------------------------------------------------
def _gate_mul_kernel(g_ref, x_ref, o_ref):
    # g_ref: (C, 1) sigmoid gate (x.dtype).  x_ref/o_ref: (C, hw_tile).
    # Out-of-bounds lanes of a partial last tile are computed but the output
    # DMA clips them.
    o_ref[...] = x_ref[...] * g_ref[...]


def _eca_fused(x3, w, *, inv_hw, vmem_limit_bytes):
    B, C, HW = x3.shape
    itemsize = jnp.dtype(x3.dtype).itemsize
    return pl.pallas_call(
        functools.partial(_fused_eca_kernel, inv_hw=inv_hw),
        out_shape=jax.ShapeDtypeStruct((B, C, HW), x3.dtype),
        grid=(B,),
        in_specs=[
            pl.BlockSpec(memory_space=pltpu.MemorySpace.SMEM),           # taps
            pl.BlockSpec((pl.Squeezed(), C, HW), lambda b: (b, 0, 0)),   # x
        ],
        out_specs=pl.BlockSpec((pl.Squeezed(), C, HW), lambda b: (b, 0, 0)),
        compiler_params=pltpu.CompilerParams(
            dimension_semantics=("parallel",),
            vmem_limit_bytes=vmem_limit_bytes,
        ),
        cost_estimate=pl.CostEstimate(
            flops=int(2 * B * C * HW + 8 * B * C),
            transcendentals=int(B * C),
            bytes_accessed=int(2 * B * C * HW * itemsize),
        ),
    )(w, x3)


def _eca_two_pass(x3, w, *, inv_hw, pass1_block_bytes, pass2_block_bytes,
                  vmem_limit_bytes):
    B, C, HW = x3.shape
    itemsize = jnp.dtype(x3.dtype).itemsize

    # ---- Pass 1: global average pool (input-only stream -> bigger blocks) ----
    hw_tile1 = _pick_hw_tile(HW, C, itemsize, pass1_block_bytes)
    n_s1 = pl.cdiv(HW, hw_tile1)
    ragged1 = (HW % hw_tile1) != 0

    # TODO(synk): for B == 1 on v7x (2 TensorCores) split the spatial reduction
    # over an extra leading "parallel" grid axis so both cores contribute.
    pooled = pl.pallas_call(
        functools.partial(_pool_kernel, inv_hw=inv_hw, hw=HW,
                          hw_tile=hw_tile1, ragged=ragged1),
        out_shape=jax.ShapeDtypeStruct((B, C, 1), jnp.float32),
        grid=(B, n_s1),
        in_specs=[
            pl.BlockSpec((pl.Squeezed(), C, hw_tile1), lambda b, s: (b, 0, s)),
        ],
        out_specs=pl.BlockSpec((pl.Squeezed(), C, 1), lambda b, s: (b, 0, 0)),
        compiler_params=pltpu.CompilerParams(
            dimension_semantics=("parallel", "arbitrary"),
            vmem_limit_bytes=vmem_limit_bytes,
        ),
        cost_estimate=pl.CostEstimate(
            flops=int(B * C * HW),
            transcendentals=0,
            bytes_accessed=int(B * C * HW * itemsize + 2 * B * C * 4 * n_s1),
        ),
    )(x3)

    # Tiny O(B*C) wrapper math: 3-tap channel conv + sigmoid, computed once per
    # (batch, channel) instead of once per spatial tile inside the kernel.
    y = pooled[:, :, 0]                                     # (B, C) f32
    yp = jnp.pad(y, ((0, 0), (1, 1)))
    conv = w[0] * yp[:, :-2] + w[1] * yp[:, 1:-1] + w[2] * yp[:, 2:]
    gate = jax.nn.sigmoid(conv).astype(x3.dtype)[:, :, None]  # (B, C, 1)

    # ---- Pass 2: broadcast multiply (read + write stream) ----
    hw_tile2 = _pick_hw_tile(HW, C, itemsize, pass2_block_bytes)
    n_s2 = pl.cdiv(HW, hw_tile2)

    return pl.pallas_call(
        _gate_mul_kernel,
        out_shape=jax.ShapeDtypeStruct((B, C, HW), x3.dtype),
        grid=(B, n_s2),
        in_specs=[
            pl.BlockSpec((pl.Squeezed(), C, 1), lambda b, s: (b, 0, 0)),
            pl.BlockSpec((pl.Squeezed(), C, hw_tile2), lambda b, s: (b, 0, s)),
        ],
        out_specs=pl.BlockSpec((pl.Squeezed(), C, hw_tile2),
                               lambda b, s: (b, 0, s)),
        compiler_params=pltpu.CompilerParams(
            dimension_semantics=("parallel", "parallel"),
            vmem_limit_bytes=vmem_limit_bytes,
        ),
        cost_estimate=pl.CostEstimate(
            flops=int(B * C * HW),
            transcendentals=0,
            bytes_accessed=int(2 * B * C * HW * itemsize),
        ),
    )(gate, x3)


def eca_forward(x, conv_weight, *, max_fused_slab_bytes=None,
                pass1_block_bytes=None, pass2_block_bytes=None,
                vmem_limit_bytes=None):
    """ECA forward. x: (B, C, H, W); conv_weight: Conv1d(1,1,3) taps (any shape
    reshapable to (3,)).  Keyword args override the per-generation budgets."""
    B, C, H, W = x.shape
    HW = H * W
    itemsize = jnp.dtype(x.dtype).itemsize

    budgets = _budgets()
    if max_fused_slab_bytes is None:
        max_fused_slab_bytes = budgets["fuse_slab"]
    if pass1_block_bytes is None:
        pass1_block_bytes = budgets["pass1_block"]
    if pass2_block_bytes is None:
        pass2_block_bytes = budgets["pass2_block"]
    if vmem_limit_bytes is None:
        vmem_limit_bytes = budgets["vmem_limit"]

    x3 = x.reshape(B, C, HW)  # contiguous -> free; lane-dense last dim
    w = jnp.asarray(conv_weight, dtype=jnp.float32).reshape(-1)
    assert w.shape[0] == 3, "this kernel implements the default k_size=3"
    inv_hw = 1.0 / HW
    slab_bytes = C * HW * itemsize

    if slab_bytes <= max_fused_slab_bytes:
        try:
            out3 = _eca_fused(x3, w, inv_hw=inv_hw,
                              vmem_limit_bytes=vmem_limit_bytes)
            return out3.reshape(B, C, H, W)
        except Exception:
            # Defensive: if the fused kernel fails to lower on this
            # toolchain/shape (e.g. exotic channel counts), fall back to the
            # numerically identical two-pass path.
            pass

    out3 = _eca_two_pass(x3, w, inv_hw=inv_hw,
                         pass1_block_bytes=pass1_block_bytes,
                         pass2_block_bytes=pass2_block_bytes,
                         vmem_limit_bytes=vmem_limit_bytes)
    return out3.reshape(B, C, H, W)


def eca_reference(x, conv_weight):
    """Pure-JAX reference mirroring the PyTorch module."""
    w = jnp.asarray(conv_weight, dtype=jnp.float32).reshape(-1)
    y = jnp.mean(x.astype(jnp.float32), axis=(2, 3))  # (B, C)
    yp = jnp.pad(y, ((0, 0), (1, 1)))
    conv = w[0] * yp[:, :-2] + w[1] * yp[:, 1:-1] + w[2] * yp[:, 2:]
    a = jax.nn.sigmoid(conv)  # (B, C)
    return (x * a[:, :, None, None].astype(x.dtype)).astype(x.dtype)


if __name__ == "__main__":
    key = jax.random.PRNGKey(0)
    kx, kw, kx2 = jax.random.split(key, 3)

    # Deterministic init of Conv1d(1, 1, k=3, bias=False) weight -> (3,)
    bound = 1.0 / np.sqrt(3.0)
    conv_w = jax.random.uniform(kw, (3,), minval=-bound, maxval=bound,
                                dtype=jnp.float32)

    # --- Test 1: fused single-pass path (small per-batch slab) ---
    B, C, H, W = 2, 64, 16, 16
    x = jax.random.normal(kx, (B, C, H, W), dtype=jnp.float32)
    out = jax.block_until_ready(eca_forward(x, conv_w))
    ref = eca_reference(x, conv_w)
    np.testing.assert_allclose(np.asarray(out), np.asarray(ref),
                               rtol=1e-5, atol=1e-5)

    # --- Test 2: force the tiled two-pass fallback (incl. ragged last tile:
    #     HW = 2304 with a 512-lane tile -> 5 tiles, last half-valid) ---
    x2 = jax.random.normal(kx2, (2, 64, 48, 48), dtype=jnp.float32)
    out2 = jax.block_until_ready(
        eca_forward(x2, conv_w,
                    max_fused_slab_bytes=0,
                    pass1_block_bytes=128 * 1024,
                    pass2_block_bytes=128 * 1024))
    ref2 = eca_reference(x2, conv_w)
    np.testing.assert_allclose(np.asarray(out2), np.asarray(ref2),
                               rtol=1e-5, atol=1e-5)

    print("KERNEL_OK")
</pallas_src>

<mosaic_0001>
module attributes {stable_mosaic.version = 11 : i64} {
  func.func @_fused_eca_kernel(%arg0: i32, %arg1: memref<3xf32, #tpu.memory_space<smem>>, %arg2: memref<1x64x256xf32, #tpu.memory_space<vmem>>, %arg3: memref<1x64x256xf32, #tpu.memory_space<vmem>>) attributes {dimension_semantics = [#tpu.dimension_semantics<parallel>], iteration_bounds = array<i64: 2>, scalar_prefetch = 0 : i64, scratch_operands = 0 : i64, tpu.core_type = #tpu.core_type<tc>, window_params = [{transform_indices = @transform_0, window_bounds = array<i64: 3>}, {transform_indices = @transform_1, window_bounds = array<i64: 1, 64, 256>}, {transform_indices = @transform_2, window_bounds = array<i64: 1, 64, 256>}]} {
    %c0 = arith.constant 0 : index
    %c0_0 = arith.constant 0 : index
    %c0_1 = arith.constant 0 : index
    %0 = vector.load %arg2[%c0, %c0_0, %c0_1] : memref<1x64x256xf32, #tpu.memory_space<vmem>>, vector<1x64x256xf32>
    %1 = vector.shape_cast %0 : vector<1x64x256xf32> to vector<64x256xf32>
    %cst = arith.constant dense<0.000000e+00> : vector<64xf32>
    %2 = vector.multi_reduction <add>, %1, %cst [1] : vector<64x256xf32> to vector<64xf32>
    %3 = vector.shape_cast %2 : vector<64xf32> to vector<64x1xf32>
    %cst_2 = arith.constant 3.906250e-03 : f32
    %4 = vector.broadcast %cst_2 : f32 to vector<64x1xf32>
    %5 = arith.mulf %3, %4 : vector<64x1xf32>
    %c1_i32 = arith.constant 1 : i32
    %6 = tpu.dynamic_rotate %5 by %c1_i32 dim 0 : vector<64x1xf32>, i32 -> vector<64x1xf32>
    %c63_i32 = arith.constant 63 : i32
    %7 = tpu.dynamic_rotate %5 by %c63_i32 dim 0 : vector<64x1xf32>, i32 -> vector<64x1xf32>
    %8 = tpu.iota {dimensions = array<i32: 0>} : vector<64x1xi32>
    %c0_i32 = arith.constant 0 : i32
    %9 = vector.broadcast %c0_i32 : i32 to vector<64x1xi32>
    %10 = arith.cmpi eq, %8, %9 : vector<64x1xi32>
    %cst_3 = arith.constant 0.000000e+00 : f32
    %11 = vector.broadcast %cst_3 : f32 to vector<64x1xf32>
    %12 = arith.select %10, %11, %6 : vector<64x1xi1>, vector<64x1xf32>
    %c63_i32_4 = arith.constant 63 : i32
    %13 = vector.broadcast %c63_i32_4 : i32 to vector<64x1xi32>
    %14 = arith.cmpi eq, %8, %13 : vector<64x1xi32>
    %cst_5 = arith.constant 0.000000e+00 : f32
    %15 = vector.broadcast %cst_5 : f32 to vector<64x1xf32>
    %16 = arith.select %14, %15, %7 : vector<64x1xi1>, vector<64x1xf32>
    %c0_6 = arith.constant 0 : index
    %17 = memref.load %arg1[%c0_6] : memref<3xf32, #tpu.memory_space<smem>>
    %18 = vector.broadcast %17 : f32 to vector<64x1xf32>
    %19 = arith.mulf %18, %12 : vector<64x1xf32>
    %c1 = arith.constant 1 : index
    %20 = memref.load %arg1[%c1] : memref<3xf32, #tpu.memory_space<smem>>
    %21 = vector.broadcast %20 : f32 to vector<64x1xf32>
    %22 = arith.mulf %21, %5 : vector<64x1xf32>
    %23 = arith.addf %19, %22 : vector<64x1xf32>
    %c2 = arith.constant 2 : index
    %24 = memref.load %arg1[%c2] : memref<3xf32, #tpu.memory_space<smem>>
    %25 = vector.broadcast %24 : f32 to vector<64x1xf32>
    %26 = arith.mulf %25, %16 : vector<64x1xf32>
    %27 = arith.addf %23, %26 : vector<64x1xf32>
    %28 = arith.negf %27 : vector<64x1xf32>
    %29 = math.exp %28 : vector<64x1xf32>
    %cst_7 = arith.constant 1.000000e+00 : f32
    %30 = vector.broadcast %cst_7 : f32 to vector<64x1xf32>
    %31 = arith.addf %30, %29 : vector<64x1xf32>
    %32 = arith.divf %30, %31 : vector<64x1xf32>
    %33 = vector.broadcast %32 : vector<64x1xf32> to vector<64x256xf32>
    %34 = arith.mulf %1, %33 : vector<64x256xf32>
    %c0_8 = arith.constant 0 : index
    %c0_9 = arith.constant 0 : index
    %c0_10 = arith.constant 0 : index
    %35 = vector.load %arg3[%c0_8, %c0_9, %c0_10] : memref<1x64x256xf32, #tpu.memory_space<vmem>>, vector<1x64x256xf32>
    %36 = vector.shape_cast %35 : vector<1x64x256xf32> to vector<64x256xf32>
    %37 = vector.shape_cast %34 : vector<64x256xf32> to vector<1x64x256xf32>
    tpu.vector_store %arg3[%c0_8, %c0_9, %c0_10], %37 {strides = array<i32>} : memref<1x64x256xf32, #tpu.memory_space<vmem>>, vector<1x64x256xf32>,
    return
  }
  func.func @transform_0(%arg0: i32) -> i32 {
    %c0_i32 = arith.constant 0 : i32
    %c0_i32_0 = arith.constant 0 : i32
    return %c0_i32 : i32
  }
  func.func @transform_1(%arg0: i32) -> (i32, i32, i32) {
    %c0_i32 = arith.constant 0 : i32
    %c0_i32_0 = arith.constant 0 : i32
    %c0_i32_1 = arith.constant 0 : i32
    return %arg0, %c0_i32, %c0_i32_0 : i32, i32, i32
  }
  func.func @transform_2(%arg0: i32) -> (i32, i32, i32) {
    %c0_i32 = arith.constant 0 : i32
    %c0_i32_0 = arith.constant 0 : i32
    %c0_i32_1 = arith.constant 0 : i32
    return %arg0, %c0_i32, %c0_i32_0 : i32, i32, i32
  }
}

module attributes {stable_mosaic.version = 11 : i64} {
  func.func @_pool_kernel(%arg0: i32, %arg1: i32, %arg2: memref<1x64x256xf32, #tpu.memory_space<vmem>>, %arg3: memref<1x64x1xf32, #tpu.memory_space<vmem>>) attributes {dimension_semantics = [#tpu.dimension_semantics<parallel>, #tpu.dimension_semantics<arbitrary>], iteration_bounds = array<i64: 2, 1>, scalar_prefetch = 0 : i64, scratch_operands = 0 : i64, tpu.core_type = #tpu.core_type<tc>, window_params = [{transform_indices = @transform_0, window_bounds = array<i64: 1, 64, 256>}, {transform_indices = @transform_1, window_bounds = array<i64: 1, 64, 1>}]} {
    %c0_i32 = arith.constant 0 : i32
    %0 = arith.cmpi eq, %arg1, %c0_i32 : i32
    %1 = arith.extui %0 : i1 to i32
    %c0_i32_0 = arith.constant 0 : i32
    %2 = arith.cmpi ne, %1, %c0_i32_0 : i32
    scf.if %2 {
      %cst_11 = arith.constant 0.000000e+00 : f32
      %16 = vector.broadcast %cst_11 : f32 to vector<64x1xf32>
      %c0_12 = arith.constant 0 : index
      %c0_13 = arith.constant 0 : index
      %c0_14 = arith.constant 0 : index
      %17 = vector.load %arg3[%c0_12, %c0_13, %c0_14] : memref<1x64x1xf32, #tpu.memory_space<vmem>>, vector<1x64x1xf32>
      %18 = vector.shape_cast %17 : vector<1x64x1xf32> to vector<64x1xf32>
      %19 = vector.shape_cast %16 : vector<64x1xf32> to vector<1x64x1xf32>
      tpu.vector_store %arg3[%c0_12, %c0_13, %c0_14], %19 {strides = array<i32>} : memref<1x64x1xf32, #tpu.memory_space<vmem>>, vector<1x64x1xf32>,
    } else {
    }
    %c0 = arith.constant 0 : index
    %c0_1 = arith.constant 0 : index
    %c0_2 = arith.constant 0 : index
    %3 = vector.load %arg2[%c0, %c0_1, %c0_2] : memref<1x64x256xf32, #tpu.memory_space<vmem>>, vector<1x64x256xf32>
    %4 = vector.shape_cast %3 : vector<1x64x256xf32> to vector<64x256xf32>
    %c0_3 = arith.constant 0 : index
    %c0_4 = arith.constant 0 : index
    %c0_5 = arith.constant 0 : index
    %5 = vector.load %arg3[%c0_3, %c0_4, %c0_5] : memref<1x64x1xf32, #tpu.memory_space<vmem>>, vector<1x64x1xf32>
    %6 = vector.shape_cast %5 : vector<1x64x1xf32> to vector<64x1xf32>
    %cst = arith.constant dense<0.000000e+00> : vector<64xf32>
    %7 = vector.multi_reduction <add>, %4, %cst [1] : vector<64x256xf32> to vector<64xf32>
    %8 = vector.shape_cast %7 : vector<64xf32> to vector<64x1xf32>
    %9 = arith.addf %6, %8 : vector<64x1xf32>
    %c0_6 = arith.constant 0 : index
    %c0_7 = arith.constant 0 : index
    %c0_8 = arith.constant 0 : index
    %10 = vector.load %arg3[%c0_6, %c0_7, %c0_8] : memref<1x64x1xf32, #tpu.memory_space<vmem>>, vector<1x64x1xf32>
    %11 = vector.shape_cast %10 : vector<1x64x1xf32> to vector<64x1xf32>
    %12 = vector.shape_cast %9 : vector<64x1xf32> to vector<1x64x1xf32>
    tpu.vector_store %arg3[%c0_6, %c0_7, %c0_8], %12 {strides = array<i32>} : memref<1x64x1xf32, #tpu.memory_space<vmem>>, vector<1x64x1xf32>,
    %c0_i32_9 = arith.constant 0 : i32
    %13 = arith.cmpi eq, %arg1, %c0_i32_9 : i32
    %14 = arith.extui %13 : i1 to i32
    %c0_i32_10 = arith.constant 0 : i32
    %15 = arith.cmpi ne, %14, %c0_i32_10 : i32
    scf.if %15 {
      %c0_11 = arith.constant 0 : index
      %c0_12 = arith.constant 0 : index
      %c0_13 = arith.constant 0 : index
      %16 = vector.load %arg3[%c0_11, %c0_12, %c0_13] : memref<1x64x1xf32, #tpu.memory_space<vmem>>, vector<1x64x1xf32>
      %17 = vector.shape_cast %16 : vector<1x64x1xf32> to vector<64x1xf32>
      %cst_14 = arith.constant 3.906250e-03 : f32
      %18 = vector.broadcast %cst_14 : f32 to vector<64x1xf32>
      %19 = arith.mulf %17, %18 : vector<64x1xf32>
      %c0_15 = arith.constant 0 : index
      %c0_16 = arith.constant 0 : index
      %c0_17 = arith.constant 0 : index
      %20 = vector.load %arg3[%c0_15, %c0_16, %c0_17] : memref<1x64x1xf32, #tpu.memory_space<vmem>>, vector<1x64x1xf32>
      %21 = vector.shape_cast %20 : vector<1x64x1xf32> to vector<64x1xf32>
      %22 = vector.shape_cast %19 : vector<64x1xf32> to vector<1x64x1xf32>
      tpu.vector_store %arg3[%c0_15, %c0_16, %c0_17], %22 {strides = array<i32>} : memref<1x64x1xf32, #tpu.memory_space<vmem>>, vector<1x64x1xf32>,
    } else {
    }
    return
  }
  func.func @transform_0(%arg0: i32, %arg1: i32) -> (i32, i32, i32) {
    %c0_i32 = arith.constant 0 : i32
    %c0_i32_0 = arith.constant 0 : i32
    return %arg0, %c0_i32, %arg1 : i32, i32, i32
  }
  func.func @transform_1(%arg0: i32, %arg1: i32) -> (i32, i32, i32) {
    %c0_i32 = arith.constant 0 : i32
    %c0_i32_0 = arith.constant 0 : i32
    %c0_i32_1 = arith.constant 0 : i32
    return %arg0, %c0_i32, %c0_i32_0 : i32, i32, i32
  }
}

</mosaic_0001>

<llo_original>
// kernel: tpu_custom_call.1
$region0: #{tpu_custom_call.1}
  #allocation0 [shape = 'u32[]', space=smem, size = 0x4, offset = 0x4, fixed_abs, tag = 'smem constant byte address 0x4 - core index']
  #allocation1 [shape = 'u32[72,128]{1,0:T(1,128)}', space=vmem, size = 0x9000, scoped, tag = 'internal scratch']
  %s0 = inlined_call_operand.hbm [shape: f32[3], index: 0, kind: input, shape index: {}]
  %s1 = inlined_call_operand.hbm [shape: f32[2,64,256], index: 1, kind: input, shape index: {}]
  %s2 = inlined_call_operand.hbm [shape: f32[2,64,256], index: 2, kind: output, shape index: {}]
  %s3 = sld [smem:[#allocation0]]
  $region49: #{tpu_custom_call.1} parent=0
    _
  %s5 = ssub.s32 1, %s3
  %s6 = scalar_select 0, %s5, %s3
  $region1: #{tpu_custom_call.1} parent=0
    #allocation2 [shape = 'u8[512]{0}', space=smem, size = 0x200, scoped, tag = 'input window, operand 0, single buffered']
    #allocation3 [shape = 's32[2]{0}', space=sflag, size = 0x8, scoped, tag = 'scoped memory for tpu_custom_call.1']
    #allocation4 [shape = 's32[2]{0}', space=sflag, size = 0x8, scoped, tag = 'scoped memory for tpu_custom_call.1']
    #allocation5 [shape = 's32[2]{0}', space=sflag, size = 0x8, scoped, tag = 'scoped memory for tpu_custom_call.1']
    #allocation6 [shape = 'u8[131072]{0}', space=vmem, size = 0x20000, scoped, tag = 'input window, operand 1']
    #allocation7 [shape = 'u8[131072]{0}', space=vmem, size = 0x20000, scoped, tag = 'output window, operand 0']
    %7 = vsyncpa [#allocation5], 0
    %8 = vsyncpa [#allocation3], 0
    %s9 = scalar_lea.sflag [#allocation3], 1
    %10 = vsyncpa %s9, 0
    %11 = vsyncpa [#allocation4], 0
    %s12 = scalar_lea.sflag [#allocation4], 1
    %13 = vsyncpa %s12, 0
    loop: start=0, step=1, limit=4
    $region2: #{tpu_custom_call.1} parent=1 // loop_pre_header
      _
    $region3: #{tpu_custom_call.1} parent=1 // loop_header
      %s15 = sphi 0, %s19
      %p16 = scmp.ge.s32.totalorder %s15, 4
      %s23 = sphi 0, %s23
      %s25 = sphi 0, %s23
      %s26 = sphi 0, %s25
      %s40 = sphi 0, %s26
      %s46 = sphi 0, %s48
      %s49 = sphi 0, %s46
      %s50 = sphi 0, %s49
      %s66 = sphi 0, %s50
      %s72 = sphi 0, %s74
      %s75 = sphi 0, %s72
      %s76 = sphi 0, %s75
      %s92 = sphi 0, %s76
    $region4: #{tpu_custom_call.1} parent=1 // loop_header_branch
      %18 = sbr.rel (%p16) target = $region8
    $region5: #{tpu_custom_call.1} parent=1 // loop_body
      %s20 = ssub.s32 %s15, 1
      %s21 = ssub.s32 %s15, 2
      %s22 = sadd.s32 %s15, 1
      %s24 = sadd.s32 %s23, 1
      %p27 = scmp.eq.s32.totalorder %s15, 1
      %p28 = scmp.ne.s32.totalorder %s23, %s25
      %p29 = scmp.eq.s32.totalorder %s15, 0
      %p30 = por %p28, %p29
      %p31 = scmp.ne.s32.totalorder %s23, %s25
      %p32 = scmp.eq.s32.totalorder %s20, 1
      %p33 = por %p31, %p32
      %p34 = scmp.ne.s32.totalorder %s25, %s26
      %p35 = scmp.eq.s32.totalorder %s20, 0
      %p36 = por %p34, %p35
      %p37 = scmp.ne.s32.totalorder %s25, %s26
      %p38 = scmp.eq.s32.totalorder %s21, 1
      %p39 = por %p37, %p38
      %p41 = scmp.ne.s32.totalorder %s26, %s40
      %p42 = scmp.eq.s32.totalorder %s21, 0
      %p43 = por %p41, %p42
      %s44 = ssub.s32 %s15, %s22
      %p45 = scmp.eq.s32.totalorder %s44, 0
      %s47 = sadd.s32 %s46, 1
      %s48 = scalar_select %p45, %s46, %s47
      %p51 = pneg %p45
      %p52 = scmp.eq.s32.totalorder %s15, 1
      %p53 = por %p51, %p52
      %p54 = scmp.ne.s32.totalorder %s46, %s49
      %p55 = scmp.eq.s32.totalorder %s15, 0
      %p56 = por %p54, %p55
      %p57 = scmp.ne.s32.totalorder %s46, %s49
      %p58 = scmp.eq.s32.totalorder %s20, 1
      %p59 = por %p57, %p58
      %p60 = scmp.ne.s32.totalorder %s49, %s50
      %p61 = scmp.eq.s32.totalorder %s20, 0
      %p62 = por %p60, %p61
      %p63 = scmp.ne.s32.totalorder %s49, %s50
      %p64 = scmp.eq.s32.totalorder %s21, 1
      %p65 = por %p63, %p64
      %p67 = scmp.ne.s32.totalorder %s50, %s66
      %p68 = scmp.eq.s32.totalorder %s21, 0
      %p69 = por %p67, %p68
      %s70 = ssub.s32 %s15, %s22
      %p71 = scmp.eq.s32.totalorder %s70, 0
      %s73 = sadd.s32 %s72, 1
      %s74 = scalar_select %p71, %s72, %s73
      %p77 = pneg %p71
      %p78 = scmp.eq.s32.totalorder %s15, 1
      %p79 = por %p77, %p78
      %p80 = scmp.ne.s32.totalorder %s72, %s75
      %p81 = scmp.eq.s32.totalorder %s15, 0
      %p82 = por %p80, %p81
      %p83 = scmp.ne.s32.totalorder %s72, %s75
      %p84 = scmp.eq.s32.totalorder %s20, 1
      %p85 = por %p83, %p84
      %p86 = scmp.ne.s32.totalorder %s75, %s76
      %p87 = scmp.eq.s32.totalorder %s20, 0
      %p88 = por %p86, %p87
      %p89 = scmp.ne.s32.totalorder %s75, %s76
      %p90 = scmp.eq.s32.totalorder %s21, 1
      %p91 = por %p89, %p90
      %p93 = scmp.ne.s32.totalorder %s76, %s92
      %p94 = scmp.eq.s32.totalorder %s21, 0
      %p95 = por %p93, %p94
      %p96 = scmp.le.s32.totalorder 1, %s15
      %p97 = scmp.lt.s32.totalorder %s15, 3
      %p98 = pnand %p96, %p97
      %p99 = pneg %p98
      // Predicated region
      $region9: #{tpu_custom_call.1} parent=5 // pred_check
        _
      $region10: #{tpu_custom_call.1} parent=5 // pred_check_branch
        %101 = sbr.rel (%p98) target = $region12
      $region11: #{tpu_custom_call.1} parent=5 // pred_region
        %s102 = ssub.s32 %s15, 1
        // Predicated region
        $region13: #{tpu_custom_call.1} parent=11 // pred_check
          %p103 = pneg %p36
        $region14: #{tpu_custom_call.1} parent=11 // pred_check_branch
          %105 = sbr.rel (%p103) target = $region16
        $region15: #{tpu_custom_call.1} parent=11 // pred_region
          %107 = vsyncadd [#allocation5], 0
          %s109 = sshll.u32 %s0, 4
          %s110 = int_to_ptr.hbm [resolvable:$true] %s109
          %112 = dma.hbm_to_smem %s110, 16, [#allocation2], [#allocation5]
        $region16: #{tpu_custom_call.1} parent=11 // pred_fallthru
          _
      $region12: #{tpu_custom_call.1} parent=5 // pred_fallthru
        _
      %p113 = scmp.lt.s32.totalorder %s15, 2
      // Predicated region
      $region17: #{tpu_custom_call.1} parent=5 // pred_check
        %p114 = pneg %p113
      $region18: #{tpu_custom_call.1} parent=5 // pred_check_branch
        %116 = sbr.rel (%p114) target = $region20
      $region19: #{tpu_custom_call.1} parent=5 // pred_region
        // Predicated region
        $region21: #{tpu_custom_call.1} parent=19 // pred_check
          %p117 = pneg %p56
        $region22: #{tpu_custom_call.1} parent=19 // pred_check_branch
          %119 = sbr.rel (%p117) target = $region24
        $region23: #{tpu_custom_call.1} parent=19 // pred_region
          %s120 = sand.u32 %s46, 1
          %s121 = scalar_lea.sflag [#allocation3], %s120
          %s122 = sand.u32 %s46, 1
          %s123 = smul.addr %s122, 128
          %s124 = scalar_lea.vmem [#allocation6], %s123
          %126 = vsyncadd %s121, 0
          %s127 = smul.addr %s15, 16
          %s128 = smul.addr %s127, 8
          %s129 = scalar_lea.hbm %s1, %s128
          %s130 = sshll.u32 %s129, 4
          %s131 = int_to_ptr.hbm [resolvable:$true] %s130
          %s132 = sshll.u32 %s124, 4
          %s133 = int_to_ptr.vmem [resolvable:$true] %s132
          %138 = dma.hbm_to_vmem [thread:$0]  %s131, 2048, %s133, %s121, 256, 256, 16
        $region24: #{tpu_custom_call.1} parent=19 // pred_fallthru
          _
      $region20: #{tpu_custom_call.1} parent=5 // pred_fallthru
        _
      %p139 = scmp.le.s32.totalorder 1, %s15
      %p140 = scmp.lt.s32.totalorder %s15, 3
      %p141 = pnand %p139, %p140
      %p142 = pneg %p141
      // Predicated region
      $region25: #{tpu_custom_call.1} parent=5 // pred_check
        _
      $region26: #{tpu_custom_call.1} parent=5 // pred_check_branch
        %144 = sbr.rel (%p141) target = $region28
      $region27: #{tpu_custom_call.1} parent=5 // pred_region
        %s145 = ssub.s32 %s15, 1
        // Predicated region
        $region29: #{tpu_custom_call.1} parent=27 // pred_check
          %p146 = pneg %p36
        $region30: #{tpu_custom_call.1} parent=27 // pred_check_branch
          %148 = sbr.rel (%p146) target = $region32
        $region31: #{tpu_custom_call.1} parent=27 // pred_region
          %150 = dma.done [#allocation5], 16
        $region32: #{tpu_custom_call.1} parent=27 // pred_fallthru
          _
        %s151 = sand.u32 %s49, 1
        %s152 = scalar_lea.sflag [#allocation3], %s151
        %s153 = sand.u32 %s49, 1
        %s154 = smul.addr %s153, 128
        %s155 = scalar_lea.vmem [#allocation6], %s154
        // Predicated region
        $region33: #{tpu_custom_call.1} parent=27 // pred_check
          %p156 = pneg %p62
        $region34: #{tpu_custom_call.1} parent=27 // pred_check_branch
          %158 = sbr.rel (%p156) target = $region36
        $region35: #{tpu_custom_call.1} parent=27 // pred_region
          %160 = dma.done %s152, 2048
        $region36: #{tpu_custom_call.1} parent=27 // pred_fallthru
          _
        %161 = sfence
        %p162 = pneg %p36
        %p163 = pneg %p33
        %s164 = sand.u32 %s49, 1
        %s165 = scalar_lea.sflag [#allocation3], %s164
        %s166 = sand.u32 %s49, 1
        %s167 = smul.addr %s166, 128
        %s168 = scalar_lea.vmem [#allocation6], %s167
        %p169 = pneg %p62
        %p170 = pneg %p59
        %p171 = pneg %p88
        %p172 = pneg %p85
        %s173 = sand.u32 %s75, 1
        %s174 = scalar_lea.sflag [#allocation4], %s173
        %s175 = sand.u32 %s75, 1
        %s176 = smul.addr %s175, 128
        %s177 = scalar_lea.vmem [#allocation7], %s176
        %v178 = vld [vmem:[%s155] sm:$0xff]
        %v179 = vld [vmem:[%s155 + $0x8] sm:$0xff]
        %v180 = vld [vmem:[%s155 + $0x10] sm:$0xff]
        %v181 = vld [vmem:[%s155 + $0x18] sm:$0xff]
        %v182 = vld [vmem:[%s155 + $0x20] sm:$0xff]
        %v183 = vld [vmem:[%s155 + $0x28] sm:$0xff]
        %v184 = vld [vmem:[%s155 + $0x30] sm:$0xff]
        %v185 = vld [vmem:[%s155 + $0x38] sm:$0xff]
        %v186 = vld [vmem:[%s155 + $0x40] sm:$0xff]
        %v187 = vld [vmem:[%s155 + $0x48] sm:$0xff]
        %v188 = vld [vmem:[%s155 + $0x50] sm:$0xff]
        %v189 = vld [vmem:[%s155 + $0x58] sm:$0xff]
        %v190 = vld [vmem:[%s155 + $0x60] sm:$0xff]
        %v191 = vld [vmem:[%s155 + $0x68] sm:$0xff]
        %v192 = vld [vmem:[%s155 + $0x70] sm:$0xff]
        %v193 = vld [vmem:[%s155 + $0x78] sm:$0xff]
        %v194 = vadd.f32 %v178, %v179
        %195 = vadd.xlane.f32.xlu0 %v194
        %v196 = vpop.xlane.xlu0 %195
        %v197 = vadd.f32 %v180, %v181
        %198 = vadd.xlane.f32.xlu0 %v197
        %v199 = vpop.xlane.xlu0 %198
        %v200 = vadd.f32 %v182, %v183
        %201 = vadd.xlane.f32.xlu0 %v200
        %v202 = vpop.xlane.xlu0 %201
        %v203 = vadd.f32 %v184, %v185
        %204 = vadd.xlane.f32.xlu0 %v203
        %v205 = vpop.xlane.xlu0 %204
        %v206 = vadd.f32 %v186, %v187
        %207 = vadd.xlane.f32.xlu0 %v206
        %v208 = vpop.xlane.xlu0 %207
        %v209 = vadd.f32 %v188, %v189
        %210 = vadd.xlane.f32.xlu0 %v209
        %v211 = vpop.xlane.xlu0 %210
        %v212 = vadd.f32 %v190, %v191
        %213 = vadd.xlane.f32.xlu0 %v212
        %v214 = vpop.xlane.xlu0 %213
        %v215 = vadd.f32 %v192, %v193
        %216 = vadd.xlane.f32.xlu0 %v215
        %v217 = vpop.xlane.xlu0 %216
        %v218 = vmul.f32 %v196, 0.00390625
        %v219 = vmul.f32 %v199, 0.00390625
        %v220 = vmul.f32 %v202, 0.00390625
        %v221 = vmul.f32 %v205, 0.00390625
        %v222 = vmul.f32 %v208, 0.00390625
        %v223 = vmul.f32 %v211, 0.00390625
        %v224 = vmul.f32 %v214, 0.00390625
        %v225 = vmul.f32 %v217, 0.00390625
        %v226 = vrot.slane %v218, 7
        %v227 = vrot.slane %v219, 7
        %v228 = vrot.slane %v220, 7
        %v229 = vrot.slane %v221, 7
        %v230 = vrot.slane %v222, 7
        %v231 = vrot.slane %v223, 7
        %v232 = vrot.slane %v224, 7
        %v233 = vrot.slane %v225, 7
        %v234 = vlaneseq
        %v235 = vshrl.u32 %v234, 7
        %vm236 = vcmp.lt.s32.totalorder %v235, 1
        %v237 = vsel %vm236, %v232, %v233
        %v238 = vsel %vm236, %v231, %v232
        %v239 = vsel %vm236, %v230, %v231
        %v240 = vsel %vm236, %v229, %v230
        %v241 = vsel %vm236, %v228, %v229
        %v242 = vsel %vm236, %v227, %v228
        %v243 = vsel %vm236, %v226, %v227
        %v244 = vsel %vm236, %v233, %v226
        %v245 = vrot.slane %v218, 1
        %v246 = vrot.slane %v219, 1
        %v247 = vrot.slane %v220, 1
        %v248 = vrot.slane %v221, 1
        %v249 = vrot.slane %v222, 1
        %v250 = vrot.slane %v223, 1
        %v251 = vrot.slane %v224, 1
        %v252 = vrot.slane %v225, 1
        %vm253 = vcmp.lt.s32.totalorder %v235, 7
        %v254 = vsel %vm253, %v251, %v252
        %v255 = vsel %vm253, %v250, %v251
        %v256 = vsel %vm253, %v249, %v250
        %v257 = vsel %vm253, %v248, %v249
        %v258 = vsel %vm253, %v247, %v248
        %v259 = vsel %vm253, %v246, %v247
        %v260 = vsel %vm253, %v245, %v246
        %v261 = vsel %vm253, %v252, %v245
        %v262 = vadd.s32 %v235, 8
        %v263 = vadd.s32 %v235, 16
        %v264 = vadd.s32 %v235, 24
        %v265 = vadd.s32 %v235, 32
        %v266 = vadd.s32 %v235, 40
        %v267 = vadd.s32 %v235, 48
        %v268 = vadd.s32 %v235, 56
        %vm269 = vcmp.eq.s32.totalorder %v235, 0
        %vm270 = vcmp.eq.s32.totalorder %v262, 0
        %vm271 = vcmp.eq.s32.totalorder %v263, 0
        %vm272 = vcmp.eq.s32.totalorder %v264, 0
        %vm273 = vcmp.eq.s32.totalorder %v265, 0
        %vm274 = vcmp.eq.s32.totalorder %v266, 0
        %vm275 = vcmp.eq.s32.totalorder %v267, 0
        %vm276 = vcmp.eq.s32.totalorder %v268, 0
        %v277 = vsel %vm269, 0.0, %v244
        %v278 = vsel %vm270, 0.0, %v243
        %v279 = vsel %vm271, 0.0, %v242
        %v280 = vsel %vm272, 0.0, %v241
        %v281 = vsel %vm273, 0.0, %v240
        %v282 = vsel %vm274, 0.0, %v239
        %v283 = vsel %vm275, 0.0, %v238
        %v284 = vsel %vm276, 0.0, %v237
        %vm285 = vcmp.eq.s32.totalorder %v235, 63
        %vm286 = vcmp.eq.s32.totalorder %v262, 63
        %vm287 = vcmp.eq.s32.totalorder %v263, 63
        %vm288 = vcmp.eq.s32.totalorder %v264, 63
        %vm289 = vcmp.eq.s32.totalorder %v265, 63
        %vm290 = vcmp.eq.s32.totalorder %v266, 63
        %vm291 = vcmp.eq.s32.totalorder %v267, 63
        %vm292 = vcmp.eq.s32.totalorder %v268, 63
        %v293 = vsel %vm285, 0.0, %v260
        %v294 = vsel %vm286, 0.0, %v259
        %v295 = vsel %vm287, 0.0, %v258
        %v296 = vsel %vm288, 0.0, %v257
        %v297 = vsel %vm289, 0.0, %v256
        %v298 = vsel %vm290, 0.0, %v255
        %v299 = vsel %vm291, 0.0, %v254
        %v300 = vsel %vm292, 0.0, %v261
        %s301 = sld [smem:[#allocation2]]
        %v302 = vstv %s301
        %v303 = vmul.f32 %v302, %v277
        %v304 = vmul.f32 %v302, %v278
        %v305 = vmul.f32 %v302, %v279
        %v306 = vmul.f32 %v302, %v280
        %v307 = vmul.f32 %v302, %v281
        %v308 = vmul.f32 %v302, %v282
        %v309 = vmul.f32 %v302, %v283
        %v310 = vmul.f32 %v302, %v284
        %s311 = sld [smem:[#allocation2 + $0x1]]
        %v312 = vstv %s311
        %v313 = vmul.f32 %v312, %v218
        %v314 = vmul.f32 %v312, %v219
        %v315 = vmul.f32 %v312, %v220
        %v316 = vmul.f32 %v312, %v221
        %v317 = vmul.f32 %v312, %v222
        %v318 = vmul.f32 %v312, %v223
        %v319 = vmul.f32 %v312, %v224
        %v320 = vmul.f32 %v312, %v225
        %v321 = vadd.f32 %v303, %v313
        %v322 = vadd.f32 %v304, %v314
        %v323 = vadd.f32 %v305, %v315
        %v324 = vadd.f32 %v306, %v316
        %v325 = vadd.f32 %v307, %v317
        %v326 = vadd.f32 %v308, %v318
        %v327 = vadd.f32 %v309, %v319
        %v328 = vadd.f32 %v310, %v320
        %s329 = sld [smem:[#allocation2 + $0x2]]
        %v330 = vstv %s329
        %v331 = vmul.f32 %v330, %v293
        %v332 = vmul.f32 %v330, %v294
        %v333 = vmul.f32 %v330, %v295
        %v334 = vmul.f32 %v330, %v296
        %v335 = vmul.f32 %v330, %v297
        %v336 = vmul.f32 %v330, %v298
        %v337 = vmul.f32 %v330, %v299
        %v338 = vmul.f32 %v330, %v300
        %v339 = vadd.f32 %v321, %v331
        %v340 = vadd.f32 %v322, %v332
        %v341 = vadd.f32 %v323, %v333
        %v342 = vadd.f32 %v324, %v334
        %v343 = vadd.f32 %v325, %v335
        %v344 = vadd.f32 %v326, %v336
        %v345 = vadd.f32 %v327, %v337
        %v346 = vadd.f32 %v328, %v338
        %v347 = vxor.u32 %v339, 2147483648
        %v348 = vxor.u32 %v340, 2147483648
        %v349 = vxor.u32 %v341, 2147483648
        %v350 = vxor.u32 %v342, 2147483648
        %v351 = vxor.u32 %v343, 2147483648
        %v352 = vxor.u32 %v344, 2147483648
        %v353 = vxor.u32 %v345, 2147483648
        %v354 = vxor.u32 %v346, 2147483648
        %v355 = vmul.f32 %v347, 1.442695
        %v356 = vpow.pop %v355
        %v357 = vmul.f32 %v348, 1.442695
        %v358 = vpow.pop %v357
        %v359 = vmul.f32 %v349, 1.442695
        %v360 = vpow.pop %v359
        %v361 = vmul.f32 %v350, 1.442695
        %v362 = vpow.pop %v361
        %v363 = vmul.f32 %v351, 1.442695
        %v364 = vpow.pop %v363
        %v365 = vmul.f32 %v352, 1.442695
        %v366 = vpow.pop %v365
        %v367 = vmul.f32 %v353, 1.442695
        %v368 = vpow.pop %v367
        %v369 = vmul.f32 %v354, 1.442695
        %v370 = vpow.pop %v369
        %v371 = vadd.f32 %v356, 1.0
        %v372 = vadd.f32 %v358, 1.0
        %v373 = vadd.f32 %v360, 1.0
        %v374 = vadd.f32 %v362, 1.0
        %v375 = vadd.f32 %v364, 1.0
        %v376 = vadd.f32 %v366, 1.0
        %v377 = vadd.f32 %v368, 1.0
        %v378 = vadd.f32 %v370, 1.0
        %v379 = vrcp.pop %v371
        %v380 = vmul.f32 %v371, %v379
        %v381 = vsub.f32 1.0, %v380
        %v382 = vmul.f32 %v379, %v381
        %v383 = vadd.f32 %v379, %v382
        %vm384 = vweird.f32 %v371
        %vm385 = vweird.f32 %v379
        %vm386 = vmor %vm384, %vm385
        %v387 = vsel %vm386, %v379, %v383
        %v388 = vand.u32 2147483647, %v371
        %vm389 = vcmp.eq.f32.partialorder %v388, 8.507059e+37
        %v390 = vand.u32 %v371, 2147483648
        %v391 = vor.u32 1.1754944e-38, %v390
        %v392 = vsel %vm389, %v391, %v387
        %v393 = vmul.f32 1.0, %v392
        %v394 = vrcp.pop %v372
        %v395 = vmul.f32 %v372, %v394
        %v396 = vsub.f32 1.0, %v395
        %v397 = vmul.f32 %v394, %v396
        %v398 = vadd.f32 %v394, %v397
        %vm399 = vweird.f32 %v372
        %vm400 = vweird.f32 %v394
        %vm401 = vmor %vm399, %vm400
        %v402 = vsel %vm401, %v394, %v398
        %v403 = vand.u32 2147483647, %v372
        %vm404 = vcmp.eq.f32.partialorder %v403, 8.507059e+37
        %v405 = vand.u32 %v372, 2147483648
        %v406 = vor.u32 1.1754944e-38, %v405
        %v407 = vsel %vm404, %v406, %v402
        %v408 = vmul.f32 1.0, %v407
        %v409 = vrcp.pop %v373
        %v410 = vmul.f32 %v373, %v409
        %v411 = vsub.f32 1.0, %v410
        %v412 = vmul.f32 %v409, %v411
        %v413 = vadd.f32 %v409, %v412
        %vm414 = vweird.f32 %v373
        %vm415 = vweird.f32 %v409
        %vm416 = vmor %vm414, %vm415
        %v417 = vsel %vm416, %v409, %v413
        %v418 = vand.u32 2147483647, %v373
        %vm419 = vcmp.eq.f32.partialorder %v418, 8.507059e+37
        %v420 = vand.u32 %v373, 2147483648
        %v421 = vor.u32 1.1754944e-38, %v420
        %v422 = vsel %vm419, %v421, %v417
        %v423 = vmul.f32 1.0, %v422
        %v424 = vrcp.pop %v374
        %v425 = vmul.f32 %v374, %v424
        %v426 = vsub.f32 1.0, %v425
        %v427 = vmul.f32 %v424, %v426
        %v428 = vadd.f32 %v424, %v427
        %vm429 = vweird.f32 %v374
        %vm430 = vweird.f32 %v424
        %vm431 = vmor %vm429, %vm430
        %v432 = vsel %vm431, %v424, %v428
        %v433 = vand.u32 2147483647, %v374
        %vm434 = vcmp.eq.f32.partialorder %v433, 8.507059e+37
        %v435 = vand.u32 %v374, 2147483648
        %v436 = vor.u32 1.1754944e-38, %v435
        %v437 = vsel %vm434, %v436, %v432
        %v438 = vmul.f32 1.0, %v437
        %v439 = vrcp.pop %v375
        %v440 = vmul.f32 %v375, %v439
        %v441 = vsub.f32 1.0, %v440
        %v442 = vmul.f32 %v439, %v441
        %v443 = vadd.f32 %v439, %v442
        %vm444 = vweird.f32 %v375
        %vm445 = vweird.f32 %v439
        %vm446 = vmor %vm444, %vm445
        %v447 = vsel %vm446, %v439, %v443
        %v448 = vand.u32 2147483647, %v375
        %vm449 = vcmp.eq.f32.partialorder %v448, 8.507059e+37
        %v450 = vand.u32 %v375, 2147483648
        %v451 = vor.u32 1.1754944e-38, %v450
        %v452 = vsel %vm449, %v451, %v447
        %v453 = vmul.f32 1.0, %v452
        %v454 = vrcp.pop %v376
        %v455 = vmul.f32 %v376, %v454
        %v456 = vsub.f32 1.0, %v455
        %v457 = vmul.f32 %v454, %v456
        %v458 = vadd.f32 %v454, %v457
        %vm459 = vweird.f32 %v376
        %vm460 = vweird.f32 %v454
        %vm461 = vmor %vm459, %vm460
        %v462 = vsel %vm461, %v454, %v458
        %v463 = vand.u32 2147483647, %v376
        %vm464 = vcmp.eq.f32.partialorder %v463, 8.507059e+37
        %v465 = vand.u32 %v376, 2147483648
        %v466 = vor.u32 1.1754944e-38, %v465
        %v467 = vsel %vm464, %v466, %v462
        %v468 = vmul.f32 1.0, %v467
        %v469 = vrcp.pop %v377
        %v470 = vmul.f32 %v377, %v469
        %v471 = vsub.f32 1.0, %v470
        %v472 = vmul.f32 %v469, %v471
        %v473 = vadd.f32 %v469, %v472
        %vm474 = vweird.f32 %v377
        %vm475 = vweird.f32 %v469
        %vm476 = vmor %vm474, %vm475
        %v477 = vsel %vm476, %v469, %v473
        %v478 = vand.u32 2147483647, %v377
        %vm479 = vcmp.eq.f32.partialorder %v478, 8.507059e+37
        %v480 = vand.u32 %v377, 2147483648
        %v481 = vor.u32 1.1754944e-38, %v480
        %v482 = vsel %vm479, %v481, %v477
        %v483 = vmul.f32 1.0, %v482
        %v484 = vrcp.pop %v378
        %v485 = vmul.f32 %v378, %v484
        %v486 = vsub.f32 1.0, %v485
        %v487 = vmul.f32 %v484, %v486
        %v488 = vadd.f32 %v484, %v487
        %vm489 = vweird.f32 %v378
        %vm490 = vweird.f32 %v484
        %vm491 = vmor %vm489, %vm490
        %v492 = vsel %vm491, %v484, %v488
        %v493 = vand.u32 2147483647, %v378
        %vm494 = vcmp.eq.f32.partialorder %v493, 8.507059e+37
        %v495 = vand.u32 %v378, 2147483648
        %v496 = vor.u32 1.1754944e-38, %v495
        %v497 = vsel %vm494, %v496, %v492
        %v498 = vmul.f32 1.0, %v497
        %500 = vset.pattern.permute.xlu0 0
        %501 = vperm.xlu0 %500, %v393
        %v502 = vpop.permute.xlu0 %501
        %505 = vset.pattern.permute.xlu0 0
        %506 = vperm.xlu0 %505, %v408
        %v507 = vpop.permute.xlu0 %506
        %510 = vset.pattern.permute.xlu0 0
        %511 = vperm.xlu0 %510, %v423
        %v512 = vpop.permute.xlu0 %511
        %515 = vset.pattern.permute.xlu0 0
        %516 = vperm.xlu0 %515, %v438
        %v517 = vpop.permute.xlu0 %516
        %520 = vset.pattern.permute.xlu0 0
        %521 = vperm.xlu0 %520, %v453
        %v522 = vpop.permute.xlu0 %521
        %525 = vset.pattern.permute.xlu0 0
        %526 = vperm.xlu0 %525, %v468
        %v527 = vpop.permute.xlu0 %526
        %530 = vset.pattern.permute.xlu0 0
        %531 = vperm.xlu0 %530, %v483
        %v532 = vpop.permute.xlu0 %531
        %535 = vset.pattern.permute.xlu0 0
        %536 = vperm.xlu0 %535, %v498
        %v537 = vpop.permute.xlu0 %536
        %v539 = vmul.f32 %v178, %v502
        %v540 = vmul.f32 %v179, %v502
        %v541 = vmul.f32 %v180, %v507
        %v542 = vmul.f32 %v181, %v507
        %v543 = vmul.f32 %v182, %v512
        %v544 = vmul.f32 %v183, %v512
        %v545 = vmul.f32 %v184, %v517
        %v546 = vmul.f32 %v185, %v517
        %v547 = vmul.f32 %v186, %v522
        %v548 = vmul.f32 %v187, %v522
        %v549 = vmul.f32 %v188, %v527
        %v550 = vmul.f32 %v189, %v527
        %v551 = vmul.f32 %v190, %v532
        %v552 = vmul.f32 %v191, %v532
        %v553 = vmul.f32 %v192, %v537
        %v554 = vmul.f32 %v193, %v537
        %555 = vst [vmem:[%s177] sm:$0xff] %v539
        %556 = vst [vmem:[%s177 + $0x8] sm:$0xff] %v540
        %557 = vst [vmem:[%s177 + $0x10] sm:$0xff] %v541
        %558 = vst [vmem:[%s177 + $0x18] sm:$0xff] %v542
        %559 = vst [vmem:[%s177 + $0x20] sm:$0xff] %v543
        %560 = vst [vmem:[%s177 + $0x28] sm:$0xff] %v544
        %561 = vst [vmem:[%s177 + $0x30] sm:$0xff] %v545
        %562 = vst [vmem:[%s177 + $0x38] sm:$0xff] %v546
        %563 = vst [vmem:[%s177 + $0x40] sm:$0xff] %v547
        %564 = vst [vmem:[%s177 + $0x48] sm:$0xff] %v548
        %565 = vst [vmem:[%s177 + $0x50] sm:$0xff] %v549
        %566 = vst [vmem:[%s177 + $0x58] sm:$0xff] %v550
        %567 = vst [vmem:[%s177 + $0x60] sm:$0xff] %v551
        %568 = vst [vmem:[%s177 + $0x68] sm:$0xff] %v552
        %569 = vst [vmem:[%s177 + $0x70] sm:$0xff] %v553
        %570 = vst [vmem:[%s177 + $0x78] sm:$0xff] %v554
        %s571 = sand.u32 %s75, 1
        %s572 = scalar_lea.sflag [#allocation4], %s571
        %s573 = sand.u32 %s75, 1
        %s574 = smul.addr %s573, 128
        %s575 = scalar_lea.vmem [#allocation7], %s574
        // Predicated region
        $region37: #{tpu_custom_call.1} parent=27 // pred_check
          %p576 = pneg %p85
        $region38: #{tpu_custom_call.1} parent=27 // pred_check_branch
          %578 = sbr.rel (%p576) target = $region40
        $region39: #{tpu_custom_call.1} parent=27 // pred_region
          %580 = vsyncadd %s572, 0
          %s581 = smul.addr %s20, 16
          %s582 = smul.addr %s581, 8
          %s583 = scalar_lea.hbm %s2, %s582
          %s584 = sshll.u32 %s575, 4
          %s585 = int_to_ptr.vmem [resolvable:$true] %s584
          %s586 = sshll.u32 %s583, 4
          %s587 = int_to_ptr.hbm [resolvable:$true] %s586
          %592 = dma.vmem_to_hbm [thread:$0]  %s585, 2048, %s587, %s572, 256, 256, 16
        $region40: #{tpu_custom_call.1} parent=27 // pred_fallthru
          _
      $region28: #{tpu_custom_call.1} parent=5 // pred_fallthru
        _
      %p593 = scmp.le.s32.totalorder 2, %s15
      // Predicated region
      $region41: #{tpu_custom_call.1} parent=5 // pred_check
        %p594 = pneg %p593
      $region42: #{tpu_custom_call.1} parent=5 // pred_check_branch
        %596 = sbr.rel (%p594) target = $region44
      $region43: #{tpu_custom_call.1} parent=5 // pred_region
        %s597 = ssub.s32 %s15, 2
        // Predicated region
        $region45: #{tpu_custom_call.1} parent=43 // pred_check
          %p598 = pneg %p91
        $region46: #{tpu_custom_call.1} parent=43 // pred_check_branch
          %600 = sbr.rel (%p598) target = $region48
        $region47: #{tpu_custom_call.1} parent=43 // pred_region
          %s601 = sand.u32 %s76, 1
          %s602 = scalar_lea.sflag [#allocation4], %s601
          %s603 = sand.u32 %s76, 1
          %s604 = smul.addr %s603, 128
          %s605 = scalar_lea.vmem [#allocation7], %s604
          %607 = dma.done %s602, 2048
        $region48: #{tpu_custom_call.1} parent=43 // pred_fallthru
          _
      $region44: #{tpu_custom_call.1} parent=5 // pred_fallthru
        _
    $region6: #{tpu_custom_call.1} parent=1 // loop_footer
      %s19 = sadd.s32 1, %s15
    $region7: #{tpu_custom_call.1} parent=1 // loop_footer_branch
      %14 = sbr.rel target = $region3
    $region8: #{tpu_custom_call.1} parent=1 // loop_exit
      _
    %608 = vsyncpa [#allocation3], 1
    %s609 = scalar_lea.sflag [#allocation3], 1
    %610 = vsyncpa %s609, 1
    %611 = vsyncpa [#allocation4], 1
    %s612 = scalar_lea.sflag [#allocation4], 1
    %613 = vsyncpa %s612, 1
    %614 = vsyncpa [#allocation5], 1
    %s615 = scalar_lea.sflag [#allocation5], 1
    %616 = vsyncpa %s615, 1

// kernel: tpu_custom_call.1
$region0: #{tpu_custom_call.1}
  #allocation0 [shape = 'u32[]', space=smem, size = 0x4, offset = 0x4, fixed_abs, tag = 'smem constant byte address 0x4 - core index']
  #allocation1 [shape = 'u32[72,128]{1,0:T(1,128)}', space=vmem, size = 0x9000, scoped, tag = 'internal scratch']
  %s0 = inlined_call_operand.hbm [shape: f32[2,64,256], index: 0, kind: input, shape index: {}]
  %s1 = inlined_call_operand.vmem [shape: f32[2,64,1], index: 1, kind: output, shape index: {}]
  %s2 = sld [smem:[#allocation0]]
  $region49: #{tpu_custom_call.1} parent=0
    _
  %s4 = ssub.s32 1, %s2
  %s5 = scalar_select 0, %s4, %s2
  $region1: #{tpu_custom_call.1} parent=0
    #allocation2 [shape = 'u8[131072]{0}', space=vmem, size = 0x20000, scoped, tag = 'input window, operand 0']
    #allocation3 [shape = 's32[2]{0}', space=sflag, size = 0x8, scoped, tag = 'scoped memory for tpu_custom_call.1']
    %6 = vsyncpa [#allocation3], 0
    %s7 = scalar_lea.sflag [#allocation3], 1
    %8 = vsyncpa %s7, 0
    loop: start=0, step=1, limit=4
    $region2: #{tpu_custom_call.1} parent=1 // loop_pre_header
      _
    $region3: #{tpu_custom_call.1} parent=1 // loop_header
      %s10 = sphi 0, %s14
      %p11 = scmp.ge.s32.totalorder %s10, 4
      %s17 = sphi 0, %s29
      %s18 = sphi 0, %s25
      %s19 = sphi 0, %s17
      %s20 = sphi 0, %s18
      %s21 = sphi 0, %s19
      %s22 = sphi 0, %s20
      %s34 = sphi 0, %s36
      %s37 = sphi 0, %s34
      %s38 = sphi 0, %s37
      %s54 = sphi 0, %s38
      %s60 = sphi 0, %s62
      %s63 = sphi 0, %s60
      %s64 = sphi 0, %s63
      %s80 = sphi 0, %s64
    $region4: #{tpu_custom_call.1} parent=1 // loop_header_branch
      %13 = sbr.rel (%p11) target = $region8
    $region5: #{tpu_custom_call.1} parent=1 // loop_body
      %s15 = ssub.s32 %s10, 1
      %s16 = ssub.s32 %s10, 2
      %s23 = sadd.s32 1, %s18
      %p24 = scmp.ge.s32.totalorder %s23, 1
      %s25 = scalar_select %p24, 0, %s23
      %s26 = sadd.s32 1, %s17
      %s27 = scalar_select %p24, %s26, %s17
      %p28 = scmp.ge.s32.totalorder %s27, 2
      %s29 = scalar_select %p28, 0, %s27
      %s30 = ssub.s32 %s17, %s29
      %s31 = ssub.s32 %s18, %s25
      %s32 = sor.u32 %s30, %s31
      %p33 = scmp.eq.s32.totalorder %s32, 0
      %s35 = sadd.s32 %s34, 1
      %s36 = scalar_select %p33, %s34, %s35
      %p39 = pneg %p33
      %p40 = scmp.eq.s32.totalorder %s10, 1
      %p41 = por %p39, %p40
      %p42 = scmp.ne.s32.totalorder %s34, %s37
      %p43 = scmp.eq.s32.totalorder %s10, 0
      %p44 = por %p42, %p43
      %p45 = scmp.ne.s32.totalorder %s34, %s37
      %p46 = scmp.eq.s32.totalorder %s15, 1
      %p47 = por %p45, %p46
      %p48 = scmp.ne.s32.totalorder %s37, %s38
      %p49 = scmp.eq.s32.totalorder %s15, 0
      %p50 = por %p48, %p49
      %p51 = scmp.ne.s32.totalorder %s37, %s38
      %p52 = scmp.eq.s32.totalorder %s16, 1
      %p53 = por %p51, %p52
      %p55 = scmp.ne.s32.totalorder %s38, %s54
      %p56 = scmp.eq.s32.totalorder %s16, 0
      %p57 = por %p55, %p56
      %s58 = ssub.s32 %s17, %s29
      %p59 = scmp.eq.s32.totalorder %s58, 0
      %s61 = sadd.s32 %s60, 1
      %s62 = scalar_select %p59, %s60, %s61
      %p65 = pneg %p59
      %p66 = scmp.eq.s32.totalorder %s10, 1
      %p67 = por %p65, %p66
      %p68 = scmp.ne.s32.totalorder %s60, %s63
      %p69 = scmp.eq.s32.totalorder %s10, 0
      %p70 = por %p68, %p69
      %p71 = scmp.ne.s32.totalorder %s60, %s63
      %p72 = scmp.eq.s32.totalorder %s15, 1
      %p73 = por %p71, %p72
      %p74 = scmp.ne.s32.totalorder %s63, %s64
      %p75 = scmp.eq.s32.totalorder %s15, 0
      %p76 = por %p74, %p75
      %p77 = scmp.ne.s32.totalorder %s63, %s64
      %p78 = scmp.eq.s32.totalorder %s16, 1
      %p79 = por %p77, %p78
      %p81 = scmp.ne.s32.totalorder %s64, %s80
      %p82 = scmp.eq.s32.totalorder %s16, 0
      %p83 = por %p81, %p82
      %p84 = scmp.le.s32.totalorder 1, %s10
      %p85 = scmp.lt.s32.totalorder %s10, 3
      %p86 = pnand %p84, %p85
      %p87 = pneg %p86
      // Predicated region
      $region9: #{tpu_custom_call.1} parent=5 // pred_check
        _
      $region10: #{tpu_custom_call.1} parent=5 // pred_check_branch
        %89 = sbr.rel (%p86) target = $region12
      $region11: #{tpu_custom_call.1} parent=5 // pred_region
        %s90 = ssub.s32 %s10, 1
      $region12: #{tpu_custom_call.1} parent=5 // pred_fallthru
        _
      %p91 = scmp.lt.s32.totalorder %s10, 2
      // Predicated region
      $region13: #{tpu_custom_call.1} parent=5 // pred_check
        %p92 = pneg %p91
      $region14: #{tpu_custom_call.1} parent=5 // pred_check_branch
        %94 = sbr.rel (%p92) target = $region16
      $region15: #{tpu_custom_call.1} parent=5 // pred_region
        // Predicated region
        $region17: #{tpu_custom_call.1} parent=15 // pred_check
          %p95 = pneg %p44
        $region18: #{tpu_custom_call.1} parent=15 // pred_check_branch
          %97 = sbr.rel (%p95) target = $region20
        $region19: #{tpu_custom_call.1} parent=15 // pred_region
          %s98 = sand.u32 %s34, 1
          %s99 = scalar_lea.sflag [#allocation3], %s98
          %s100 = sand.u32 %s34, 1
          %s101 = smul.addr %s100, 128
          %s102 = scalar_lea.vmem [#allocation2], %s101
          %s103 = smul.u32 2, %s18
          %105 = vsyncadd %s99, 0
          %s106 = smul.addr %s17, 16
          %s107 = sadd.s32 %s103, %s106
          %s108 = smul.addr %s107, 8
          %s109 = scalar_lea.hbm %s0, %s108
          %s110 = sshll.u32 %s109, 4
          %s111 = int_to_ptr.hbm [resolvable:$true] %s110
          %s112 = sshll.u32 %s102, 4
          %s113 = int_to_ptr.vmem [resolvable:$true] %s112
          %118 = dma.hbm_to_vmem [thread:$0]  %s111, 2048, %s113, %s99, 256, 256, 16
        $region20: #{tpu_custom_call.1} parent=15 // pred_fallthru
          _
      $region16: #{tpu_custom_call.1} parent=5 // pred_fallthru
        _
      %p119 = scmp.le.s32.totalorder 1, %s10
      %p120 = scmp.lt.s32.totalorder %s10, 3
      %p121 = pnand %p119, %p120
      %p122 = pneg %p121
      // Predicated region
      $region21: #{tpu_custom_call.1} parent=5 // pred_check
        _
      $region22: #{tpu_custom_call.1} parent=5 // pred_check_branch
        %124 = sbr.rel (%p121) target = $region24
      $region23: #{tpu_custom_call.1} parent=5 // pred_region
        %s125 = ssub.s32 %s10, 1
        %s126 = sand.u32 %s37, 1
        %s127 = scalar_lea.sflag [#allocation3], %s126
        %s128 = sand.u32 %s37, 1
        %s129 = smul.addr %s128, 128
        %s130 = scalar_lea.vmem [#allocation2], %s129
        // Predicated region
        $region25: #{tpu_custom_call.1} parent=23 // pred_check
          %p131 = pneg %p50
        $region26: #{tpu_custom_call.1} parent=23 // pred_check_branch
          %133 = sbr.rel (%p131) target = $region28
        $region27: #{tpu_custom_call.1} parent=23 // pred_region
          %135 = dma.done %s127, 2048
        $region28: #{tpu_custom_call.1} parent=23 // pred_fallthru
          _
        %s136 = sand.u32 %s37, 1
        %s137 = scalar_lea.sflag [#allocation3], %s136
        %s138 = sand.u32 %s37, 1
        %s139 = smul.addr %s138, 128
        %s140 = scalar_lea.vmem [#allocation2], %s139
        %p141 = pneg %p50
        %p142 = pneg %p47
        %p143 = pneg %p76
        %p144 = pneg %p73
        %p145 = scmp.lt.s32.totalorder %s19, 1
        %s146 = scalar_select %p145, %s19, 1
        %s147 = smul.addr %s146, 8
        %s148 = smul.addr %s147, 8
        %s149 = scalar_lea.vmem %s1, %s148
        %s150 = smul.u32 2, %s20
        %p151 = scmp.lt.s32.totalorder %s19, 1
        %s152 = scalar_select %p151, %s19, 1
        %s153 = smul.addr %s152, 8
        %s154 = smul.addr %s153, 8
        %s155 = scalar_lea.vmem %s1, %s154
        %p156 = scmp.eq.s32.totalorder %s20, 0
        // Predicated region
        $region29: #{tpu_custom_call.1} parent=23 // pred_check
          %p157 = pneg %p156
        $region30: #{tpu_custom_call.1} parent=23 // pred_check_branch
          %159 = sbr.rel (%p157) target = $region32
        $region31: #{tpu_custom_call.1} parent=23 // pred_region
          %vm160 = vcmask 7168
          %161 = vst.msk [vmem:[%s155] sm:$0xff] %vm160, 0.0
          %162 = vst.msk [vmem:[%s155 + $0x8] sm:$0xff] %vm160, 0.0
          %163 = vst.msk [vmem:[%s155 + $0x10] sm:$0xff] %vm160, 0.0
          %164 = vst.msk [vmem:[%s155 + $0x18] sm:$0xff] %vm160, 0.0
          %165 = vst.msk [vmem:[%s155 + $0x20] sm:$0xff] %vm160, 0.0
          %166 = vst.msk [vmem:[%s155 + $0x28] sm:$0xff] %vm160, 0.0
          %167 = vst.msk [vmem:[%s155 + $0x30] sm:$0xff] %vm160, 0.0
          %168 = vst.msk [vmem:[%s155 + $0x38] sm:$0xff] %vm160, 0.0
        $region32: #{tpu_custom_call.1} parent=23 // pred_fallthru
          _
        %v169 = vld [vmem:[%s130] sm:$0xff]
        %v170 = vld [vmem:[%s130 + $0x8] sm:$0xff]
        %v171 = vld [vmem:[%s130 + $0x10] sm:$0xff]
        %v172 = vld [vmem:[%s130 + $0x18] sm:$0xff]
        %v173 = vld [vmem:[%s130 + $0x20] sm:$0xff]
        %v174 = vld [vmem:[%s130 + $0x28] sm:$0xff]
        %v175 = vld [vmem:[%s130 + $0x30] sm:$0xff]
        %v176 = vld [vmem:[%s130 + $0x38] sm:$0xff]
        %v177 = vld [vmem:[%s130 + $0x40] sm:$0xff]
        %v178 = vld [vmem:[%s130 + $0x48] sm:$0xff]
        %v179 = vld [vmem:[%s130 + $0x50] sm:$0xff]
        %v180 = vld [vmem:[%s130 + $0x58] sm:$0xff]
        %v181 = vld [vmem:[%s130 + $0x60] sm:$0xff]
        %v182 = vld [vmem:[%s130 + $0x68] sm:$0xff]
        %v183 = vld [vmem:[%s130 + $0x70] sm:$0xff]
        %v184 = vld [vmem:[%s130 + $0x78] sm:$0xff]
        %v185 = vld [vmem:[%s155] sm:$0xff]
        %v186 = vld [vmem:[%s155 + $0x8] sm:$0xff]
        %v187 = vld [vmem:[%s155 + $0x10] sm:$0xff]
        %v188 = vld [vmem:[%s155 + $0x18] sm:$0xff]
        %v189 = vld [vmem:[%s155 + $0x20] sm:$0xff]
        %v190 = vld [vmem:[%s155 + $0x28] sm:$0xff]
        %v191 = vld [vmem:[%s155 + $0x30] sm:$0xff]
        %v192 = vld [vmem:[%s155 + $0x38] sm:$0xff]
        %v193 = vadd.f32 %v169, %v170
        %194 = vadd.xlane.f32.xlu0 %v193
        %v195 = vpop.xlane.xlu0 %194
        %v196 = vadd.f32 %v171, %v172
        %197 = vadd.xlane.f32.xlu0 %v196
        %v198 = vpop.xlane.xlu0 %197
        %v199 = vadd.f32 %v173, %v174
        %200 = vadd.xlane.f32.xlu0 %v199
        %v201 = vpop.xlane.xlu0 %200
        %v202 = vadd.f32 %v175, %v176
        %203 = vadd.xlane.f32.xlu0 %v202
        %v204 = vpop.xlane.xlu0 %203
        %v205 = vadd.f32 %v177, %v178
        %206 = vadd.xlane.f32.xlu0 %v205
        %v207 = vpop.xlane.xlu0 %206
        %v208 = vadd.f32 %v179, %v180
        %209 = vadd.xlane.f32.xlu0 %v208
        %v210 = vpop.xlane.xlu0 %209
        %v211 = vadd.f32 %v181, %v182
        %212 = vadd.xlane.f32.xlu0 %v211
        %v213 = vpop.xlane.xlu0 %212
        %v214 = vadd.f32 %v183, %v184
        %215 = vadd.xlane.f32.xlu0 %v214
        %v216 = vpop.xlane.xlu0 %215
        %v217 = vadd.f32 %v185, %v195
        %v218 = vadd.f32 %v186, %v198
        %v219 = vadd.f32 %v187, %v201
        %v220 = vadd.f32 %v188, %v204
        %v221 = vadd.f32 %v189, %v207
        %v222 = vadd.f32 %v190, %v210
        %v223 = vadd.f32 %v191, %v213
        %v224 = vadd.f32 %v192, %v216
        %vm225 = vcmask 7168
        %226 = vst.msk [vmem:[%s155] sm:$0xff] %vm225, %v217
        %227 = vst.msk [vmem:[%s155 + $0x8] sm:$0xff] %vm225, %v218
        %228 = vst.msk [vmem:[%s155 + $0x10] sm:$0xff] %vm225, %v219
        %229 = vst.msk [vmem:[%s155 + $0x18] sm:$0xff] %vm225, %v220
        %230 = vst.msk [vmem:[%s155 + $0x20] sm:$0xff] %vm225, %v221
        %231 = vst.msk [vmem:[%s155 + $0x28] sm:$0xff] %vm225, %v222
        %232 = vst.msk [vmem:[%s155 + $0x30] sm:$0xff] %vm225, %v223
        %233 = vst.msk [vmem:[%s155 + $0x38] sm:$0xff] %vm225, %v224
        // Predicated region
        $region33: #{tpu_custom_call.1} parent=23 // pred_check
          %p234 = pneg %p156
        $region34: #{tpu_custom_call.1} parent=23 // pred_check_branch
          %236 = sbr.rel (%p234) target = $region36
        $region35: #{tpu_custom_call.1} parent=23 // pred_region
          %v237 = vld [vmem:[%s155] sm:$0xff]
          %v238 = vld [vmem:[%s155 + $0x8] sm:$0xff]
          %v239 = vld [vmem:[%s155 + $0x10] sm:$0xff]
          %v240 = vld [vmem:[%s155 + $0x18] sm:$0xff]
          %v241 = vld [vmem:[%s155 + $0x20] sm:$0xff]
          %v242 = vld [vmem:[%s155 + $0x28] sm:$0xff]
          %v243 = vld [vmem:[%s155 + $0x30] sm:$0xff]
          %v244 = vld [vmem:[%s155 + $0x38] sm:$0xff]
          %v245 = vmul.f32 %v237, 0.00390625
          %v246 = vmul.f32 %v238, 0.00390625
          %v247 = vmul.f32 %v239, 0.00390625
          %v248 = vmul.f32 %v240, 0.00390625
          %v249 = vmul.f32 %v241, 0.00390625
          %v250 = vmul.f32 %v242, 0.00390625
          %v251 = vmul.f32 %v243, 0.00390625
          %v252 = vmul.f32 %v244, 0.00390625
          %253 = vst.msk [vmem:[%s155] sm:$0xff] %vm225, %v245
          %254 = vst.msk [vmem:[%s155 + $0x8] sm:$0xff] %vm225, %v246
          %255 = vst.msk [vmem:[%s155 + $0x10] sm:$0xff] %vm225, %v247
          %256 = vst.msk [vmem:[%s155 + $0x18] sm:$0xff] %vm225, %v248
          %257 = vst.msk [vmem:[%s155 + $0x20] sm:$0xff] %vm225, %v249
          %258 = vst.msk [vmem:[%s155 + $0x28] sm:$0xff] %vm225, %v250
          %259 = vst.msk [vmem:[%s155 + $0x30] sm:$0xff] %vm225, %v251
          %260 = vst.msk [vmem:[%s155 + $0x38] sm:$0xff] %vm225, %v252
        $region36: #{tpu_custom_call.1} parent=23 // pred_fallthru
          _
        %p261 = scmp.lt.s32.totalorder %s19, 1
        %s262 = scalar_select %p261, %s19, 1
        %s263 = smul.addr %s262, 8
        %s264 = smul.addr %s263, 8
        %s265 = scalar_lea.vmem %s1, %s264
        // Predicated region
        $region37: #{tpu_custom_call.1} parent=23 // pred_check
          %p266 = pneg %p73
        $region38: #{tpu_custom_call.1} parent=23 // pred_check_branch
          %268 = sbr.rel (%p266) target = $region40
        $region39: #{tpu_custom_call.1} parent=23 // pred_region
          _
        $region40: #{tpu_custom_call.1} parent=23 // pred_fallthru
          _
      $region24: #{tpu_custom_call.1} parent=5 // pred_fallthru
        _
      %p269 = scmp.le.s32.totalorder 2, %s10
      // Predicated region
      $region41: #{tpu_custom_call.1} parent=5 // pred_check
        %p270 = pneg %p269
      $region42: #{tpu_custom_call.1} parent=5 // pred_check_branch
        %272 = sbr.rel (%p270) target = $region44
      $region43: #{tpu_custom_call.1} parent=5 // pred_region
        %s273 = ssub.s32 %s10, 2
        // Predicated region
        $region45: #{tpu_custom_call.1} parent=43 // pred_check
          %p274 = pneg %p79
        $region46: #{tpu_custom_call.1} parent=43 // pred_check_branch
          %276 = sbr.rel (%p274) target = $region48
        $region47: #{tpu_custom_call.1} parent=43 // pred_region
          %p277 = scmp.lt.s32.totalorder %s21, 1
          %s278 = scalar_select %p277, %s21, 1
          %s279 = smul.addr %s278, 8
          %s280 = smul.addr %s279, 8
          %s281 = scalar_lea.vmem %s1, %s280
        $region48: #{tpu_custom_call.1} parent=43 // pred_fallthru
          _
      $region44: #{tpu_custom_call.1} parent=5 // pred_fallthru
        _
    $region6: #{tpu_custom_call.1} parent=1 // loop_footer
      %s14 = sadd.s32 1, %s10
    $region7: #{tpu_custom_call.1} parent=1 // loop_footer_branch
      %9 = sbr.rel target = $region3
    $region8: #{tpu_custom_call.1} parent=1 // loop_exit
      _
    %282 = vsyncpa [#allocation3], 1
    %s283 = scalar_lea.sflag [#allocation3], 1
    %284 = vsyncpa %s283, 1

</llo_original>
